<compile_context>
chip_gen: v7x
topology: tpu7x:2x2x1
jax: 0.10.0
libtpu: 0.0.40
codegen_flags: <defaults>
</compile_context>

<pallas_src>
import functools

import jax
import jax.numpy as jnp
from jax import lax
from jax.experimental import pallas as pl
from jax.experimental.pallas import tpu as pltpu


def _round_up(x, m):
    return ((x + m - 1) // m) * m


def _stats_kernel(x_ref, m_ref, wbd_ref, e_ref, bw_ref, sum_ref, m2_ref, *, n_packed, tnp):
    # Masked linear output for this packed-row tile: bf16 MXU operands, f32 accumulation.
    xb = x_ref[...].astype(jnp.bfloat16)
    h = jnp.dot(xb, wbd_ref[...], preferred_element_type=jnp.float32)        # (tnp, P*Dout)
    # Broadcast each row's mask across its Dout lanes via a tiny selector matmul (idle MXU, f32).
    mw = jnp.dot(m_ref[...], e_ref[...], preferred_element_type=jnp.float32)  # (tnp, P*Dout)
    hm = mw * (h + bw_ref[...])                                               # mask * (x @ W + b)

    # Zero rows beyond the true packed-row count (ragged last tile / uninitialized DMA region).
    # Select (not multiply) so garbage — even NaN — cannot leak into the statistics.
    prow = lax.broadcasted_iota(jnp.int32, hm.shape, 0) + pl.program_id(0) * tnp
    valid = prow < n_packed
    hm = jnp.where(valid, hm, 0.0)

    # Welford-style per-tile partials: per-lane sum and mean-centered sum of squares.
    s1 = jnp.sum(hm, axis=0, keepdims=True)                                   # (1, P*Dout)
    n_valid = jnp.minimum(n_packed - pl.program_id(0) * tnp, tnp).astype(jnp.float32)
    mu = s1 / n_valid
    dev = jnp.where(valid, hm - mu, 0.0)
    m2 = jnp.sum(dev * dev, axis=0, keepdims=True)                            # (1, P*Dout)

    sum_ref[...] = s1[None]
    m2_ref[...] = m2[None]


def _apply_kernel(x_ref, m_ref, wbd_ref, e_ref, bw_ref, scale_ref, shift_ref, o_ref, *,
                  negative_slope):
    # Recompute the masked linear output (cheaper than round-tripping h through HBM).
    xb = x_ref[...].astype(jnp.bfloat16)
    h = jnp.dot(xb, wbd_ref[...], preferred_element_type=jnp.float32)
    mw = jnp.dot(m_ref[...], e_ref[...], preferred_element_type=jnp.float32)
    hm = mw * (h + bw_ref[...])
    y = hm * scale_ref[...] + shift_ref[...]                 # fused BN affine, f32
    o_ref[...] = jnp.where(y >= 0, y, negative_slope * y).astype(o_ref.dtype)


def masked_fc_block(x, w, b, mask, gamma, beta, *,
                    eps=1e-5, negative_slope=0.2, block_rows=16384):
    """x: (B,S,Din); w: (Din,Dout) (= PyTorch weight.T); b/gamma/beta: (Dout,); mask: (B,S,1)."""
    B, S, Din = x.shape
    Dout = w.shape[1]
    N = B * S

    # Lane-dense row packing: row-major (N, Dout) is bit-identical to (N/P, P*Dout).
    if Dout <= 128 and 128 % Dout == 0 and N % (128 // Dout) == 0:
        P = 128 // Dout
    else:
        P = 1                                   # fallback: unpacked (lane-sparse but correct)
    n_packed = N // P
    kin = P * Din
    kout = P * Dout

    # Inputs go straight to the kernels — free metadata reshapes, no intermediate materialization.
    x2 = x.reshape(n_packed, kin)
    m2 = mask.reshape(n_packed, P).astype(jnp.float32)

    # Tiny packed parameters (a few KiB, built once).
    w_bd = jnp.kron(jnp.eye(P, dtype=jnp.float32), w.astype(jnp.float32)).astype(jnp.bfloat16)
    e_sel = (jnp.arange(kout)[None, :] // Dout == jnp.arange(P)[:, None]).astype(jnp.float32)
    b_wide = jnp.tile(b.astype(jnp.float32), P).reshape(1, kout)

    # Row-tile size: big tiles amortize per-step pipeline overhead; cap the double-buffered
    # VMEM footprint (~24 MiB budget) so it also fits v7x's 64 MiB physical VMEM per core.
    row_bytes = 4 * (_round_up(kin, 128) + _round_up(P, 128) + _round_up(kout, 128))
    max_tnp = max(8, ((24 * 1024 * 1024) // (2 * row_bytes)) // 8 * 8)
    tnp = min(max(8, (block_rows // P) // 8 * 8), max_tnp)
    if tnp >= n_packed:
        tnp = n_packed                          # single full-extent tile (always a legal block)
    n_tiles = pl.cdiv(n_packed, tnp)

    vmem_limit = 32 * 1024 * 1024

    # ---- Pass 1: per-tile Welford partials, fully parallel over row tiles (2-TC split on v7x). ----
    part_sum, part_m2 = pl.pallas_call(
        functools.partial(_stats_kernel, n_packed=n_packed, tnp=tnp),
        out_shape=(jax.ShapeDtypeStruct((n_tiles, 1, kout), jnp.float32),
                   jax.ShapeDtypeStruct((n_tiles, 1, kout), jnp.float32)),
        grid=(n_tiles,),
        in_specs=[pl.BlockSpec((tnp, kin), lambda i: (i, 0)),
                  pl.BlockSpec((tnp, P), lambda i: (i, 0)),
                  pl.BlockSpec((kin, kout), lambda i: (0, 0)),
                  pl.BlockSpec((P, kout), lambda i: (0, 0)),
                  pl.BlockSpec((1, kout), lambda i: (0, 0))],
        out_specs=(pl.BlockSpec((1, 1, kout), lambda i: (i, 0, 0)),
                   pl.BlockSpec((1, 1, kout), lambda i: (i, 0, 0))),
        compiler_params=pltpu.CompilerParams(
            dimension_semantics=("parallel",),
            vmem_limit_bytes=vmem_limit),
    )(x2, m2, w_bd, e_sel, b_wide)

    # Tiny wrapper-side combine (few KB; also merges the two TensorCore halves on v7x).
    cnt = jnp.clip(n_packed - jnp.arange(n_tiles) * tnp, 0, tnp).astype(jnp.float32)  # packed rows/tile
    s = part_sum.reshape(n_tiles, P, Dout)
    m2p = part_m2.reshape(n_tiles, P, Dout)
    mean_tile = s / cnt[:, None, None]
    mean = jnp.sum(s, axis=(0, 1)) / N                      # true N = B*S (masked rows included)
    var = (jnp.sum(m2p, axis=(0, 1))
           + jnp.sum(cnt[:, None, None] * (mean_tile - mean) ** 2, axis=(0, 1))) / N
    var = jnp.maximum(var, 0.0)                             # biased variance (BatchNorm1d training)
    scale = gamma.astype(jnp.float32) * lax.rsqrt(var + eps)
    shift = beta.astype(jnp.float32) - mean * scale
    scale_w = jnp.tile(scale, P).reshape(1, kout)
    shift_w = jnp.tile(shift, P).reshape(1, kout)

    # ---- Pass 2: recompute h, fused BN affine + LeakyReLU, 128-lane dense stores. ----
    out2 = pl.pallas_call(
        functools.partial(_apply_kernel, negative_slope=negative_slope),
        out_shape=jax.ShapeDtypeStruct((n_packed, kout), jnp.float32),
        grid=(n_tiles,),
        in_specs=[pl.BlockSpec((tnp, kin), lambda i: (i, 0)),
                  pl.BlockSpec((tnp, P), lambda i: (i, 0)),
                  pl.BlockSpec((kin, kout), lambda i: (0, 0)),
                  pl.BlockSpec((P, kout), lambda i: (0, 0)),
                  pl.BlockSpec((1, kout), lambda i: (0, 0)),
                  pl.BlockSpec((1, kout), lambda i: (0, 0)),
                  pl.BlockSpec((1, kout), lambda i: (0, 0))],
        out_specs=pl.BlockSpec((tnp, kout), lambda i: (i, 0)),
        compiler_params=pltpu.CompilerParams(
            dimension_semantics=("parallel",),
            vmem_limit_bytes=vmem_limit),
    )(x2, m2, w_bd, e_sel, b_wide, scale_w, shift_w)

    return out2.reshape(B, S, Dout)                         # free reshape back, no slice copy


def _reference_f32(x, w, b, mask, gamma, beta, eps=1e-5, negative_slope=0.2):
    """Pure-f32 reference of the PyTorch forward (train=True, batchnorm=True)."""
    h = jnp.einsum("bsd,de->bse", x, w) + b.reshape(1, 1, -1)
    h = h * mask
    mean = jnp.mean(h, axis=(0, 1), keepdims=True)
    var = jnp.mean((h - mean) ** 2, axis=(0, 1), keepdims=True)
    y = gamma.reshape(1, 1, -1) * (h - mean) / jnp.sqrt(var + eps) + beta.reshape(1, 1, -1)
    return jnp.where(y >= 0, y, negative_slope * y)


def _reference_bf16_policy(x, w, b, mask, gamma, beta, eps=1e-5, negative_slope=0.2):
    """Same numerics policy as the kernel: bf16 MXU operands, everything else in f32."""
    B, S, Din = x.shape
    N = B * S
    h = jnp.dot(x.reshape(N, Din).astype(jnp.bfloat16), w.astype(jnp.bfloat16),
                preferred_element_type=jnp.float32)
    hm = mask.reshape(N, 1) * (h + b.reshape(1, -1))
    mean = jnp.mean(hm, axis=0)
    var = jnp.mean((hm - mean) ** 2, axis=0)
    scale = gamma * lax.rsqrt(var + eps)
    shift = beta - mean * scale
    y = hm * scale + shift
    y = jnp.where(y >= 0, y, negative_slope * y)
    return y.reshape(B, S, -1)


if __name__ == "__main__":
    B, S, in_dim, out_dim = 2, 8, 32, 32

    key = jax.random.PRNGKey(0)
    kx, kw, kb, km, kg, kbeta = jax.random.split(key, 6)

    x = jax.random.normal(kx, (B, S, in_dim), dtype=jnp.float32)
    # Linear params stored as (in_dim, out_dim) == PyTorch weight.T
    w = jax.random.normal(kw, (in_dim, out_dim), dtype=jnp.float32) * (1.0 / jnp.sqrt(in_dim))
    b = jax.random.normal(kb, (out_dim,), dtype=jnp.float32) * 0.1
    # Binary sequence mask (B, S, 1) — plays the role of the `mask` callable.
    mask = (jax.random.uniform(km, (B, S, 1)) > 0.25).astype(jnp.float32)
    # BatchNorm affine params.
    gamma = 1.0 + 0.1 * jax.random.normal(kg, (out_dim,), dtype=jnp.float32)
    beta = 0.1 * jax.random.normal(kbeta, (out_dim,), dtype=jnp.float32)

    out = masked_fc_block(x, w, b, mask, gamma, beta)
    out = jax.block_until_ready(out)
    assert out.shape == (B, S, out_dim)

    # Tight check against a reference with the same bf16-operand policy.
    ref_policy = _reference_bf16_policy(x, w, b, mask, gamma, beta)
    assert jnp.allclose(out, ref_policy, atol=1e-3, rtol=1e-3), "mismatch vs bf16-policy reference"

    # Loose check against the pure-f32 PyTorch semantics (bf16 operand rounding ~1e-2 worst case).
    ref_f32 = _reference_f32(x, w, b, mask, gamma, beta)
    assert jnp.allclose(out, ref_f32, atol=5e-2, rtol=5e-2), "mismatch vs f32 reference"

    print("KERNEL_OK")
</pallas_src>

<mosaic_0001>
module attributes {stable_mosaic.version = 11 : i64} {
  func.func @_stats_kernel(%arg0: i32, %arg1: memref<4x128xf32, #tpu.memory_space<vmem>>, %arg2: memref<4x4xf32, #tpu.memory_space<vmem>>, %arg3: memref<128x128xbf16, #tpu.memory_space<vmem>>, %arg4: memref<4x128xf32, #tpu.memory_space<vmem>>, %arg5: memref<1x128xf32, #tpu.memory_space<vmem>>, %arg6: memref<1x1x128xf32, #tpu.memory_space<vmem>>, %arg7: memref<1x1x128xf32, #tpu.memory_space<vmem>>) attributes {dimension_semantics = [#tpu.dimension_semantics<parallel>], iteration_bounds = array<i64: 1>, scalar_prefetch = 0 : i64, scratch_operands = 0 : i64, tpu.core_type = #tpu.core_type<tc>, window_params = [{transform_indices = @transform_0, window_bounds = array<i64: 4, 128>}, {transform_indices = @transform_1, window_bounds = array<i64: 4, 4>}, {pipeline_mode = #tpu.pipeline_mode<synchronous>, transform_indices = @transform_2, window_bounds = array<i64: 128, 128>}, {pipeline_mode = #tpu.pipeline_mode<synchronous>, transform_indices = @transform_3, window_bounds = array<i64: 4, 128>}, {pipeline_mode = #tpu.pipeline_mode<synchronous>, transform_indices = @transform_4, window_bounds = array<i64: 1, 128>}, {transform_indices = @transform_5, window_bounds = array<i64: 1, 1, 128>}, {transform_indices = @transform_6, window_bounds = array<i64: 1, 1, 128>}]} {
    %c0 = arith.constant 0 : index
    %c0_0 = arith.constant 0 : index
    %0 = vector.load %arg1[%c0, %c0_0] : memref<4x128xf32, #tpu.memory_space<vmem>>, vector<4x128xf32>
    %1 = arith.truncf %0 : vector<4x128xf32> to vector<4x128xbf16>
    %c0_1 = arith.constant 0 : index
    %c0_2 = arith.constant 0 : index
    %2 = vector.load %arg3[%c0_1, %c0_2] : memref<128x128xbf16, #tpu.memory_space<vmem>>, vector<128x128xbf16>
    %cst = arith.constant dense<0.000000e+00> : vector<4x128xf32>
    %3 = tpu.matmul %1, %2, %cst {dimension_numbers = #tpu.dot_dimension_numbers<[1], [0], [0], [1], [0, 0, 1, 1], [], []>} : vector<4x128xbf16>, vector<128x128xbf16>, vector<4x128xf32> -> vector<4x128xf32>
    %c0_3 = arith.constant 0 : index
    %c0_4 = arith.constant 0 : index
    %4 = vector.load %arg2[%c0_3, %c0_4] : memref<4x4xf32, #tpu.memory_space<vmem>>, vector<4x4xf32>
    %c0_5 = arith.constant 0 : index
    %c0_6 = arith.constant 0 : index
    %5 = vector.load %arg4[%c0_5, %c0_6] : memref<4x128xf32, #tpu.memory_space<vmem>>, vector<4x128xf32>
    %cst_7 = arith.constant dense<0.000000e+00> : vector<4x128xf32>
    %6 = tpu.matmul %4, %5, %cst_7 {dimension_numbers = #tpu.dot_dimension_numbers<[1], [0], [0], [1], [0, 0, 1, 1], [], []>} : vector<4x4xf32>, vector<4x128xf32>, vector<4x128xf32> -> vector<4x128xf32>
    %c0_8 = arith.constant 0 : index
    %c0_9 = arith.constant 0 : index
    %7 = vector.load %arg5[%c0_8, %c0_9] : memref<1x128xf32, #tpu.memory_space<vmem>>, vector<1x128xf32>
    %8 = vector.broadcast %7 : vector<1x128xf32> to vector<4x128xf32>
    %9 = arith.addf %3, %8 : vector<4x128xf32>
    %10 = arith.mulf %6, %9 : vector<4x128xf32>
    %11 = tpu.iota {dimensions = array<i32: 0>} : vector<4x128xi32>
    %c4_i32 = arith.constant 4 : i32
    %12 = arith.muli %arg0, %c4_i32 : i32
    %13 = vector.broadcast %12 : i32 to vector<4x128xi32>
    %14 = arith.addi %11, %13 : vector<4x128xi32>
    %c4_i32_10 = arith.constant 4 : i32
    %15 = vector.broadcast %c4_i32_10 : i32 to vector<4x128xi32>
    %16 = arith.cmpi slt, %14, %15 : vector<4x128xi32>
    %cst_11 = arith.constant 0.000000e+00 : f32
    %17 = vector.broadcast %cst_11 : f32 to vector<4x128xf32>
    %18 = arith.select %16, %10, %17 : vector<4x128xi1>, vector<4x128xf32>
    %cst_12 = arith.constant dense<0.000000e+00> : vector<128xf32>
    %19 = vector.multi_reduction <add>, %18, %cst_12 [0] : vector<4x128xf32> to vector<128xf32>
    %20 = vector.shape_cast %19 : vector<128xf32> to vector<1x128xf32>
    %c4_i32_13 = arith.constant 4 : i32
    %21 = arith.muli %arg0, %c4_i32_13 : i32
    %c4_i32_14 = arith.constant 4 : i32
    %22 = arith.subi %c4_i32_14, %21 : i32
    %c4_i32_15 = arith.constant 4 : i32
    %23 = arith.minsi %22, %c4_i32_15 : i32
    %24 = arith.sitofp %23 : i32 to f32
    %25 = vector.broadcast %24 : f32 to vector<1x128xf32>
    %26 = arith.divf %20, %25 : vector<1x128xf32>
    %27 = vector.broadcast %26 : vector<1x128xf32> to vector<4x128xf32>
    %28 = arith.subf %18, %27 : vector<4x128xf32>
    %cst_16 = arith.constant 0.000000e+00 : f32
    %29 = vector.broadcast %cst_16 : f32 to vector<4x128xf32>
    %30 = arith.select %16, %28, %29 : vector<4x128xi1>, vector<4x128xf32>
    %31 = arith.mulf %30, %30 : vector<4x128xf32>
    %cst_17 = arith.constant dense<0.000000e+00> : vector<128xf32>
    %32 = vector.multi_reduction <add>, %31, %cst_17 [0] : vector<4x128xf32> to vector<128xf32>
    %33 = vector.shape_cast %32 : vector<128xf32> to vector<1x128xf32>
    %34 = vector.shape_cast %20 : vector<1x128xf32> to vector<1x1x128xf32>
    %c0_18 = arith.constant 0 : index
    %c0_19 = arith.constant 0 : index
    %c0_20 = arith.constant 0 : index
    %35 = vector.load %arg6[%c0_18, %c0_19, %c0_20] : memref<1x1x128xf32, #tpu.memory_space<vmem>>, vector<1x1x128xf32>
    tpu.vector_store %arg6[%c0_18, %c0_19, %c0_20], %34 {strides = array<i32>} : memref<1x1x128xf32, #tpu.memory_space<vmem>>, vector<1x1x128xf32>,
    %36 = vector.shape_cast %33 : vector<1x128xf32> to vector<1x1x128xf32>
    %c0_21 = arith.constant 0 : index
    %c0_22 = arith.constant 0 : index
    %c0_23 = arith.constant 0 : index
    %37 = vector.load %arg7[%c0_21, %c0_22, %c0_23] : memref<1x1x128xf32, #tpu.memory_space<vmem>>, vector<1x1x128xf32>
    tpu.vector_store %arg7[%c0_21, %c0_22, %c0_23], %36 {strides = array<i32>} : memref<1x1x128xf32, #tpu.memory_space<vmem>>, vector<1x1x128xf32>,
    return
  }
  func.func @transform_0(%arg0: i32) -> (i32, i32) {
    %c0_i32 = arith.constant 0 : i32
    %c0_i32_0 = arith.constant 0 : i32
    return %arg0, %c0_i32 : i32, i32
  }
  func.func @transform_1(%arg0: i32) -> (i32, i32) {
    %c0_i32 = arith.constant 0 : i32
    %c0_i32_0 = arith.constant 0 : i32
    return %arg0, %c0_i32 : i32, i32
  }
  func.func @transform_2(%arg0: i32) -> (i32, i32) {
    %c0_i32 = arith.constant 0 : i32
    %c0_i32_0 = arith.constant 0 : i32
    %c0_i32_1 = arith.constant 0 : i32
    return %c0_i32, %c0_i32_0 : i32, i32
  }
  func.func @transform_3(%arg0: i32) -> (i32, i32) {
    %c0_i32 = arith.constant 0 : i32
    %c0_i32_0 = arith.constant 0 : i32
    %c0_i32_1 = arith.constant 0 : i32
    return %c0_i32, %c0_i32_0 : i32, i32
  }
  func.func @transform_4(%arg0: i32) -> (i32, i32) {
    %c0_i32 = arith.constant 0 : i32
    %c0_i32_0 = arith.constant 0 : i32
    %c0_i32_1 = arith.constant 0 : i32
    return %c0_i32, %c0_i32_0 : i32, i32
  }
  func.func @transform_5(%arg0: i32) -> (i32, i32, i32) {
    %c0_i32 = arith.constant 0 : i32
    %c0_i32_0 = arith.constant 0 : i32
    %c0_i32_1 = arith.constant 0 : i32
    return %arg0, %c0_i32, %c0_i32_0 : i32, i32, i32
  }
  func.func @transform_6(%arg0: i32) -> (i32, i32, i32) {
    %c0_i32 = arith.constant 0 : i32
    %c0_i32_0 = arith.constant 0 : i32
    %c0_i32_1 = arith.constant 0 : i32
    return %arg0, %c0_i32, %c0_i32_0 : i32, i32, i32
  }
}

</mosaic_0001>

<llo_original>
// kernel: tpu_custom_call.1
$region0: #{tpu_custom_call.1}
  #allocation0 [shape = 'u32[]', space=smem, size = 0x4, offset = 0x4, fixed_abs, tag = 'smem constant byte address 0x4 - core index']
  #allocation1 [shape = 'u32[144,128]{1,0:T(1,128)}', space=vmem, size = 0x12000, scoped, tag = 'internal scratch']
  %s0 = inlined_call_operand.hbm [shape: f32[4,128], index: 0, kind: input, shape index: {}]
  %s1 = inlined_call_operand.hbm [shape: f32[4,4], index: 1, kind: input, shape index: {}]
  %s2 = inlined_call_operand.hbm [shape: bf16[128,128], index: 2, kind: input, shape index: {}]
  %s3 = inlined_call_operand.vmem [shape: f32[4,128], index: 3, kind: input, shape index: {}]
  %s4 = inlined_call_operand.vmem [shape: f32[1,128], index: 4, kind: input, shape index: {}]
  %s5 = inlined_call_operand.hbm [shape: f32[1,1,128], index: 5, kind: output, shape index: {0}]
  %s6 = inlined_call_operand.hbm [shape: f32[1,1,128], index: 6, kind: output, shape index: {1}]
  %7 = xla_tuple %s5, %s6
  %s8 = sld [smem:[#allocation0]]
  $region50: #{tpu_custom_call.1} parent=0
    _
  %s10 = ssub.s32 1, %s8
  %s11 = scalar_select 0, %s10, %s8
  $region1: #{tpu_custom_call.1} parent=0
    #allocation2 [shape = 'u8[2048]{0}', space=vmem, size = 0x800, scoped, tag = 'input window, operand 0, single buffered']
    #allocation3 [shape = 's32[1]{0}', space=sflag, size = 0x4, scoped, tag = 'scoped memory for tpu_custom_call.1']
    #allocation4 [shape = 's32[1]{0}', space=sflag, size = 0x4, scoped, tag = 'scoped memory for tpu_custom_call.1']
    #allocation5 [shape = 'u8[2048]{0}', space=vmem, size = 0x800, scoped, tag = 'input window, operand 1, single buffered']
    #allocation6 [shape = 's32[1]{0}', space=sflag, size = 0x4, scoped, tag = 'scoped memory for tpu_custom_call.1']
    #allocation7 [shape = 'u8[32768]{0}', space=vmem, size = 0x8000, scoped, tag = 'input window, operand 2, single buffered']
    #allocation8 [shape = 'u8[512]{0}', space=vmem, size = 0x400, scoped, tag = 'output window, operand 0, single buffered']
    #allocation9 [shape = 'u8[512]{0}', space=vmem, size = 0x400, scoped, tag = 'output window, operand 1, single buffered']
    #allocation10 [shape = 's32[1]{0}', space=sflag, size = 0x4, scoped, tag = 'scoped memory for tpu_custom_call.1']
    %12 = vsyncpa [#allocation3], 0
    %13 = vsyncpa [#allocation6], 0
    %14 = vsyncpa [#allocation4], 0
    %15 = vsyncpa [#allocation10], 0
    // Predicated region
    $region2: #{tpu_custom_call.1} parent=1 // pred_check
      _
    $region3: #{tpu_custom_call.1} parent=1 // pred_check_branch
      %17 = sbr.rel (0) target = $region5
    $region4: #{tpu_custom_call.1} parent=1 // pred_region
      %s19 = ssub.s32 64, 64
      %20 = vsyncadd [#allocation3], %s19
      %s22 = sshll.u32 [#allocation2], 4
      %s23 = int_to_ptr.vmem [resolvable:$true] %s22
      %25 = dma.hbm_to_vmem [thread:$0]  %s0, 64, %s23, [#allocation3]
    $region5: #{tpu_custom_call.1} parent=1 // pred_fallthru
      _
    // Predicated region
    $region6: #{tpu_custom_call.1} parent=1 // pred_check
      _
    $region7: #{tpu_custom_call.1} parent=1 // pred_check_branch
      %27 = sbr.rel (0) target = $region9
    $region8: #{tpu_custom_call.1} parent=1 // pred_region
      %s29 = ssub.s32 64, 64
      %30 = vsyncadd [#allocation6], %s29
      %s32 = sshll.u32 [#allocation5], 4
      %s33 = int_to_ptr.vmem [resolvable:$true] %s32
      %35 = dma.hbm_to_vmem [thread:$0]  %s1, 64, %s33, [#allocation6]
    $region9: #{tpu_custom_call.1} parent=1 // pred_fallthru
      _
    // Predicated region
    $region10: #{tpu_custom_call.1} parent=1 // pred_check
      _
    $region11: #{tpu_custom_call.1} parent=1 // pred_check_branch
      %37 = sbr.rel (0) target = $region13
    $region12: #{tpu_custom_call.1} parent=1 // pred_region
      %s39 = ssub.s32 1024, 1024
      %40 = vsyncadd [#allocation6], %s39
      %s41 = sshll.u32 [#allocation7], 4
      %s42 = int_to_ptr.vmem [resolvable:$true] %s41
      %47 = dma.hbm_to_vmem [thread:$0]  %s2, 1024, %s42, [#allocation6], 64, 64, 4
    $region13: #{tpu_custom_call.1} parent=1 // pred_fallthru
      _
    // Predicated region
    $region14: #{tpu_custom_call.1} parent=1 // pred_check
      _
    $region15: #{tpu_custom_call.1} parent=1 // pred_check_branch
      %49 = sbr.rel (0) target = $region17
    $region16: #{tpu_custom_call.1} parent=1 // pred_region
      _
    $region17: #{tpu_custom_call.1} parent=1 // pred_fallthru
      _
    // Predicated region
    $region18: #{tpu_custom_call.1} parent=1 // pred_check
      _
    $region19: #{tpu_custom_call.1} parent=1 // pred_check_branch
      %51 = sbr.rel (0) target = $region21
    $region20: #{tpu_custom_call.1} parent=1 // pred_region
      _
    $region21: #{tpu_custom_call.1} parent=1 // pred_fallthru
      _
    // Predicated region
    $region22: #{tpu_custom_call.1} parent=1 // pred_check
      _
    $region23: #{tpu_custom_call.1} parent=1 // pred_check_branch
      %53 = sbr.rel (0) target = $region25
    $region24: #{tpu_custom_call.1} parent=1 // pred_region
      %54 = dma.done [#allocation3], 64
    $region25: #{tpu_custom_call.1} parent=1 // pred_fallthru
      _
    // Predicated region
    $region26: #{tpu_custom_call.1} parent=1 // pred_check
      _
    $region27: #{tpu_custom_call.1} parent=1 // pred_check_branch
      %56 = sbr.rel (0) target = $region29
    $region28: #{tpu_custom_call.1} parent=1 // pred_region
      %57 = dma.done [#allocation6], 64
    $region29: #{tpu_custom_call.1} parent=1 // pred_fallthru
      _
    // Predicated region
    $region30: #{tpu_custom_call.1} parent=1 // pred_check
      _
    $region31: #{tpu_custom_call.1} parent=1 // pred_check_branch
      %59 = sbr.rel (0) target = $region33
    $region32: #{tpu_custom_call.1} parent=1 // pred_region
      %60 = dma.done [#allocation6], 1024
    $region33: #{tpu_custom_call.1} parent=1 // pred_fallthru
      _
    %v62 = vld [vmem:[#allocation2] sm:$0xf]
    %v63 = vpack.c.bf16 %v62, %v62
    %v64 = vld [vmem:[#allocation7] sm:$0xf]
    %v65 = vld [vmem:[#allocation7 + $0x4] sm:$0xf]
    %v66 = vld [vmem:[#allocation7 + $0x8] sm:$0xf]
    %v67 = vld [vmem:[#allocation7 + $0xc] sm:$0xf]
    %v68 = vld [vmem:[#allocation7 + $0x10] sm:$0xf]
    %v69 = vld [vmem:[#allocation7 + $0x14] sm:$0xf]
    %v70 = vld [vmem:[#allocation7 + $0x18] sm:$0xf]
    %v71 = vld [vmem:[#allocation7 + $0x1c] sm:$0xf]
    %v72 = vld [vmem:[#allocation7 + $0x20] sm:$0xf]
    %v73 = vld [vmem:[#allocation7 + $0x24] sm:$0xf]
    %v74 = vld [vmem:[#allocation7 + $0x28] sm:$0xf]
    %v75 = vld [vmem:[#allocation7 + $0x2c] sm:$0xf]
    %v76 = vld [vmem:[#allocation7 + $0x30] sm:$0xf]
    %v77 = vld [vmem:[#allocation7 + $0x34] sm:$0xf]
    %v78 = vld [vmem:[#allocation7 + $0x38] sm:$0xf]
    %v79 = vld [vmem:[#allocation7 + $0x3c] sm:$0xf]
    %v80 = vld [vmem:[#allocation5] sm:$0xf]
    %v81 = vld [vmem:[%s3] sm:$0xf]
    %vm82 = vcmask 31744
    %v84 = vsel %vm82, %v80, 0
    %vm86 = vcmask 1043456
    %v88 = vsel %vm86, %v81, 0
    %90 = vmatprep.subr.mxu0 0.0
    %91 = vmatpush1.msra.mxu0 %v88
    %92 = vmatprep.subr.mxu0 0.0
    %93 = vmatpush1.msra.mxu0 0.0
    %94 = vmatprep.subr.mxu0 0.0
    %95 = vmatpush1.msra.mxu0 0.0
    %96 = vmatprep.subr.mxu0 0.0
    %97 = vmatpush1.msra.mxu0 0.0
    %98 = vmatprep.subr.mxu0 0.0
    %99 = vmatpush1.msra.mxu0 0.0
    %100 = vmatprep.subr.mxu0 0.0
    %101 = vmatpush1.msra.mxu0 0.0
    %102 = vmatprep.subr.mxu0 0.0
    %103 = vmatpush1.msra.mxu0 0.0
    %104 = vmatprep.subr.mxu0 0.0
    %105 = vmatpush1.msra.mxu0 0.0
    %106 = vmatprep.subr.mxu0 0.0
    %107 = vmatpush1.msra.mxu0 0.0
    %108 = vmatprep.subr.mxu0 0.0
    %109 = vmatpush1.msra.mxu0 0.0
    %110 = vmatprep.subr.mxu0 0.0
    %111 = vmatpush1.msra.mxu0 0.0
    %112 = vmatprep.subr.mxu0 0.0
    %113 = vmatpush1.msra.mxu0 0.0
    %114 = vmatprep.subr.mxu0 0.0
    %115 = vmatpush1.msra.mxu0 0.0
    %116 = vmatprep.subr.mxu0 0.0
    %117 = vmatpush1.msra.mxu0 0.0
    %118 = vmatprep.subr.mxu0 0.0
    %119 = vmatpush1.msra.mxu0 0.0
    %120 = vmatprep.subr.mxu0 0.0
    %121 = vmatpush1.msra.mxu0 0.0
    %122 = vmatprep.subr.mxu0 0.0
    %123 = vmatpush1.msra.mxu0 0.0
    %124 = vmatprep.subr.mxu0 0.0
    %125 = vmatpush1.msra.mxu0 0.0
    %126 = vmatprep.subr.mxu0 0.0
    %127 = vmatpush1.msra.mxu0 0.0
    %128 = vmatprep.subr.mxu0 0.0
    %129 = vmatpush1.msra.mxu0 0.0
    %130 = vmatprep.subr.mxu0 0.0
    %131 = vmatpush1.msra.mxu0 0.0
    %132 = vmatprep.subr.mxu0 0.0
    %133 = vmatpush1.msra.mxu0 0.0
    %134 = vmatprep.subr.mxu0 0.0
    %135 = vmatpush1.msra.mxu0 0.0
    %136 = vmatprep.subr.mxu0 0.0
    %137 = vmatpush1.msra.mxu0 0.0
    %138 = vmatprep.subr.mxu0 0.0
    %139 = vmatpush1.msra.mxu0 0.0
    %140 = vmatprep.subr.mxu0 0.0
    %141 = vmatpush1.msra.mxu0 0.0
    %142 = vmatprep.subr.mxu0 0.0
    %143 = vmatpush1.msra.mxu0 0.0
    %144 = vmatprep.subr.mxu0 0.0
    %145 = vmatpush1.msra.mxu0 0.0
    %146 = vmatprep.subr.mxu0 0.0
    %147 = vmatpush1.msra.mxu0 0.0
    %148 = vmatprep.subr.mxu0 0.0
    %149 = vmatpush1.msra.mxu0 0.0
    %150 = vmatprep.subr.mxu0 0.0
    %151 = vmatpush1.msra.mxu0 0.0
    %152 = vmatprep.subr.mxu0 0.0
    %153 = vmatpush1.msra.mxu0 0.0
    %154 = vmatprep.mubr.f32.mxu0 0.0
    %155 = vmatmul.mubr.f32.gmra.mrb[0].mxu0 %v84
    %v156 = vpop.f32.mrb[0].mxu0
    %v157 = vadd.f32 0.0, %v156
    %v158 = vpop.f32.mrb[0].mxu0
    %159 = vdwg.mxu0
    %v160 = vld [vmem:[%s4] sm:$0x1]
    %v162 = vlaneseq
    %v163 = vshrl.u32 %v162, 7
    %v164 = vsub.s32 0, %v163
    %v165 = vrot.slane %v160, %v164
    %v183 = vunpack.c.l.b16 %v64
    %v184 = vunpack.c.l.b16 %v65
    %v185 = vunpack.c.l.b16 %v66
    %v186 = vunpack.c.l.b16 %v67
    %v187 = vunpack.c.l.b16 %v68
    %v188 = vunpack.c.l.b16 %v69
    %v189 = vunpack.c.l.b16 %v70
    %v190 = vunpack.c.l.b16 %v71
    %v191 = vunpack.c.l.b16 %v72
    %v192 = vunpack.c.l.b16 %v73
    %v193 = vunpack.c.l.b16 %v74
    %v194 = vunpack.c.l.b16 %v75
    %v195 = vunpack.c.l.b16 %v76
    %v196 = vunpack.c.l.b16 %v77
    %v197 = vunpack.c.l.b16 %v78
    %v198 = vunpack.c.l.b16 %v79
    %v199 = vpack.c.b16 %v184, %v183
    %v200 = vpack.c.b16 %v186, %v185
    %v201 = vpack.c.b16 %v188, %v187
    %v202 = vpack.c.b16 %v190, %v189
    %v203 = vpack.c.b16 %v192, %v191
    %v204 = vpack.c.b16 %v194, %v193
    %v205 = vpack.c.b16 %v196, %v195
    %v206 = vpack.c.b16 %v198, %v197
    %215 = vmatprep.subr.bf16.mxu0 0
    %216 = vmatpush1.bf16.msra.mxu0 %v199
    %217 = vmatprep.subr.bf16.mxu0 0
    %218 = vmatpush1.bf16.msra.mxu0 %v200
    %219 = vmatprep.subr.bf16.mxu0 0
    %220 = vmatpush1.bf16.msra.mxu0 %v201
    %221 = vmatprep.subr.bf16.mxu0 0
    %222 = vmatpush1.bf16.msra.mxu0 %v202
    %223 = vmatprep.subr.bf16.mxu0 0
    %224 = vmatpush1.bf16.msra.mxu0 %v203
    %225 = vmatprep.subr.bf16.mxu0 0
    %226 = vmatpush1.bf16.msra.mxu0 %v204
    %227 = vmatprep.subr.bf16.mxu0 0
    %228 = vmatpush1.bf16.msra.mxu0 %v205
    %229 = vmatprep.subr.bf16.mxu0 0
    %230 = vmatpush1.bf16.msra.mxu0 %v206
    %231 = vmatprep.subr.bf16.mxu0 0
    %232 = vmatpush1.bf16.msra.mxu0 0
    %233 = vmatprep.subr.bf16.mxu0 0
    %234 = vmatpush1.bf16.msra.mxu0 0
    %235 = vmatprep.subr.bf16.mxu0 0
    %236 = vmatpush1.bf16.msra.mxu0 0
    %237 = vmatprep.subr.bf16.mxu0 0
    %238 = vmatpush1.bf16.msra.mxu0 0
    %239 = vmatprep.subr.bf16.mxu0 0
    %240 = vmatpush1.bf16.msra.mxu0 0
    %241 = vmatprep.subr.bf16.mxu0 0
    %242 = vmatpush1.bf16.msra.mxu0 0
    %243 = vmatprep.subr.bf16.mxu0 0
    %244 = vmatpush1.bf16.msra.mxu0 0
    %245 = vmatprep.subr.bf16.mxu0 0
    %246 = vmatpush1.bf16.msra.mxu0 0
    %247 = vmatprep.mubr.bf16.mxu0 0
    %248 = vmatmul.mubr.bf16.gmra.mrb[0].mxu0 %v63
    %v249 = vpop.f32.mrb[0].mxu0
    %v250 = vadd.f32 %v165, %v249
    %v251 = vpop.f32.mrb[0].mxu0
    %v252 = vpop.f32.mrb[0].mxu0
    %v253 = vpop.f32.mrb[0].mxu0
    %254 = vdwg.mxu0
    %v255 = vmul.f32 %v157, %v250
    %v256 = vlaneseq
    %v257 = vshrl.u32 %v256, 7
    %s258 = smul.u32 0, 4
    %v259 = vstv %s258
    %v260 = vadd.s32 %v257, %v259
    %vm261 = vcmp.lt.s32.totalorder %v260, 4
    %v262 = vsel %vm261, %v255, 0.0
    %v263 = vsel %vm86, %v262, 0.0
    %v264 = vrot.slane %v263, 4
    %v265 = vadd.f32 %v263, %v264
    %v266 = vrot.slane %v265, 2
    %v267 = vadd.f32 %v265, %v266
    %v268 = vrot.slane %v267, 1
    %v269 = vadd.f32 %v267, %v268
    %s270 = ssub.s32 4, %s258
    %p271 = scmp.lt.s32.totalorder %s270, 4
    %s272 = scalar_select %p271, %s270, 4
    %s273 = scvt.s32.f32 %s272
    %v274 = vstv %s273
    %v275 = vrcp.pop %v274
    %v276 = vmul.f32 %v269, %v275
    %v277 = vsub.f32 %v262, %v276
    %v278 = vsel %vm261, %v277, 0.0
    %v279 = vmul.f32 %v278, %v278
    %v280 = vsel %vm86, %v279, 0.0
    %v281 = vrot.slane %v280, 4
    %v282 = vadd.f32 %v280, %v281
    %v283 = vrot.slane %v282, 2
    %v284 = vadd.f32 %v282, %v283
    %v285 = vrot.slane %v284, 1
    %v286 = vadd.f32 %v284, %v285
    %287 = vst [vmem:[#allocation8] sm:$0x1] %v269
    %288 = vst [vmem:[#allocation9] sm:$0x1] %v286
    // Predicated region
    $region34: #{tpu_custom_call.1} parent=1 // pred_check
      _
    $region35: #{tpu_custom_call.1} parent=1 // pred_check_branch
      %290 = sbr.rel (0) target = $region37
    $region36: #{tpu_custom_call.1} parent=1 // pred_region
      %s292 = ssub.s32 16, 16
      %293 = vsyncadd [#allocation4], %s292
      %s295 = sshll.u32 [#allocation8], 4
      %s296 = int_to_ptr.vmem [resolvable:$true] %s295
      %298 = dma.vmem_to_hbm [thread:$0]  %s296, 16, %s5, [#allocation4]
    $region37: #{tpu_custom_call.1} parent=1 // pred_fallthru
      _
    // Predicated region
    $region38: #{tpu_custom_call.1} parent=1 // pred_check
      _
    $region39: #{tpu_custom_call.1} parent=1 // pred_check_branch
      %300 = sbr.rel (0) target = $region41
    $region40: #{tpu_custom_call.1} parent=1 // pred_region
      %s302 = ssub.s32 16, 16
      %303 = vsyncadd [#allocation10], %s302
      %s305 = sshll.u32 [#allocation9], 4
      %s306 = int_to_ptr.vmem [resolvable:$true] %s305
      %308 = dma.vmem_to_hbm [thread:$0]  %s306, 16, %s6, [#allocation10]
    $region41: #{tpu_custom_call.1} parent=1 // pred_fallthru
      _
    // Predicated region
    $region42: #{tpu_custom_call.1} parent=1 // pred_check
      _
    $region43: #{tpu_custom_call.1} parent=1 // pred_check_branch
      %310 = sbr.rel (0) target = $region45
    $region44: #{tpu_custom_call.1} parent=1 // pred_region
      %311 = dma.done [#allocation4], 16
    $region45: #{tpu_custom_call.1} parent=1 // pred_fallthru
      _
    // Predicated region
    $region46: #{tpu_custom_call.1} parent=1 // pred_check
      _
    $region47: #{tpu_custom_call.1} parent=1 // pred_check_branch
      %313 = sbr.rel (0) target = $region49
    $region48: #{tpu_custom_call.1} parent=1 // pred_region
      %314 = dma.done [#allocation10], 16
    $region49: #{tpu_custom_call.1} parent=1 // pred_fallthru
      _
    %315 = vsyncpa [#allocation3], 1
    %316 = vsyncpa [#allocation6], 1
    %317 = vsyncpa [#allocation4], 1
    %318 = vsyncpa [#allocation10], 1

</llo_original>
